<compile_context>
chip_gen: v7x
topology: tpu7x:2x2x1
jax: 0.10.0
libtpu: 0.0.40
codegen_flags: <defaults>
</compile_context>

<pallas_src>
import functools

import jax
import jax.numpy as jnp
from jax.experimental import pallas as pl
from jax.experimental.pallas import tpu as pltpu

_MIN_SPLIT_B = 2048          # below this, don't bother splitting into 2 tiles
_VMEM_LIMIT_BYTES = 64 << 20  # explicit scoped-VMEM cap (safe on v5e/v6e/v7x)


def _round_up(x, m):
    return ((x + m - 1) // m) * m


def mlp_kernel(x_ref, w1_ref, b1_ref, w2_ref, b2_ref, w34_ref, b34_ref, o_ref):
    """Fused MLP tile: relu(x@w1+b1) -> relu(.@w2+b2) -> .@w34+b34.

    x arrives pre-cast to bf16; weights are bf16, biases f32; all matmuls
    accumulate in f32 on the MXU.  Dropout (eval mode) is identity.
    """
    xb = x_ref[...]                                    # bf16 tile

    # Linear(input_dim, 128) -> Dropout (identity) -> ReLU
    h1 = jnp.dot(xb, w1_ref[...], preferred_element_type=jnp.float32) + b1_ref[...]
    h1 = jnp.maximum(h1, 0.0).astype(jnp.bfloat16)

    # Linear(128, 256) -> Dropout (identity) -> ReLU
    h2 = jnp.dot(h1, w2_ref[...], preferred_element_type=jnp.float32) + b2_ref[...]
    h2 = jnp.maximum(h2, 0.0).astype(jnp.bfloat16)

    # Folded Linear(256,128) + Linear(128,out_dim)  (exact: no activation between)
    out = jnp.dot(h2, w34_ref[...], preferred_element_type=jnp.float32) + b34_ref[...]
    o_ref[...] = out.astype(o_ref.dtype)


def prepare_params(params):
    """Cast weights to bf16 and fold the activation-free L3/L4 pair (in f32)."""
    w3 = params["w3"].astype(jnp.float32)
    w4 = params["w4"].astype(jnp.float32)
    b3 = params["b3"].astype(jnp.float32)
    b4 = params["b4"].astype(jnp.float32)
    w34 = w3 @ w4                      # (256, out_dim)
    b34 = b3 @ w4 + b4                 # (1, out_dim)
    return {
        "w1": params["w1"].astype(jnp.bfloat16),
        "b1": params["b1"].astype(jnp.float32),
        "w2": params["w2"].astype(jnp.bfloat16),
        "b2": params["b2"].astype(jnp.float32),
        "w34": w34.astype(jnp.bfloat16),
        "b34": b34,
    }


@functools.partial(jax.jit, static_argnames=("tile_b",))
def wesad_feedforward(x, prepped, tile_b=4096):
    """x: [B, input_dim]; prepped: output of prepare_params(). Returns [B, out_dim] f32."""
    B, D = x.shape
    out_dim = prepped["w34"].shape[1]

    # Single boundary cast to bf16 (halves input DMA into the kernel).
    if x.dtype != jnp.bfloat16:
        x = x.astype(jnp.bfloat16)

    # Batch tile: big enough to amortize ~0.35us/step grid overhead, but keep
    # >=2 grid steps for large batches (engages the 2nd TensorCore on v7x).
    tb = min(tile_b, _round_up(B, 8))
    if B >= _MIN_SPLIT_B and _round_up(B, tb) // tb < 2:
        tb = _round_up(pl.cdiv(B, 2), 8)
    Bp = _round_up(B, tb)
    if Bp != B:
        x = jnp.pad(x, ((0, Bp - B), (0, 0)))

    grid = (Bp // tb,)

    const = lambda i: (0, 0)                    # weights/biases stay resident in VMEM
    in_specs = [
        pl.BlockSpec((tb, D), lambda i: (i, 0)),            # x tile, pipelined
        pl.BlockSpec(prepped["w1"].shape, const),
        pl.BlockSpec(prepped["b1"].shape, const),
        pl.BlockSpec(prepped["w2"].shape, const),
        pl.BlockSpec(prepped["b2"].shape, const),
        pl.BlockSpec(prepped["w34"].shape, const),
        pl.BlockSpec(prepped["b34"].shape, const),
    ]
    # Narrow, contiguous output tile: out_dim real columns only (f32).
    out_spec = pl.BlockSpec((tb, out_dim), lambda i: (i, 0))

    h1_dim = prepped["w1"].shape[1]
    h2_dim = prepped["w2"].shape[1]
    flops = 2 * Bp * (D * h1_dim + h1_dim * h2_dim + h2_dim * out_dim)
    weight_bytes = sum(int(prepped[k].size) * prepped[k].dtype.itemsize
                       for k in ("w1", "b1", "w2", "b2", "w34", "b34"))
    bytes_accessed = Bp * (D * 2 + out_dim * 4) + weight_bytes

    out = pl.pallas_call(
        mlp_kernel,
        out_shape=jax.ShapeDtypeStruct((Bp, out_dim), jnp.float32),
        grid=grid,
        in_specs=in_specs,
        out_specs=out_spec,
        compiler_params=pltpu.CompilerParams(
            dimension_semantics=("parallel",),
            vmem_limit_bytes=_VMEM_LIMIT_BYTES),
        cost_estimate=pl.CostEstimate(
            flops=flops, transcendentals=0, bytes_accessed=bytes_accessed),
    )(x,
      prepped["w1"], prepped["b1"],
      prepped["w2"], prepped["b2"],
      prepped["w34"], prepped["b34"])

    return out[:B]


def init_params(key, input_dim, output_dim=3):
    """Deterministic init mimicking PyTorch Linear default (uniform +-1/sqrt(fan_in))."""
    dims = [(input_dim, 128), (128, 256), (256, 128), (128, output_dim)]
    params = {}
    for i, (fan_in, fan_out) in enumerate(dims, start=1):
        key, kw, kb = jax.random.split(key, 3)
        bound = 1.0 / jnp.sqrt(float(fan_in))
        params[f"w{i}"] = jax.random.uniform(
            kw, (fan_in, fan_out), jnp.float32, minval=-bound, maxval=bound)
        # keep biases 2D [1, fan_out] for TPU-friendly broadcasting
        params[f"b{i}"] = jax.random.uniform(
            kb, (1, fan_out), jnp.float32, minval=-bound, maxval=bound)
    return params


def reference_forward(x, prepped):
    """Pure-JAX reference mirroring the kernel's exact numeric policy."""
    xb = x.astype(jnp.bfloat16)
    h1 = jnp.maximum(
        jnp.dot(xb, prepped["w1"], preferred_element_type=jnp.float32)
        + prepped["b1"], 0.0).astype(jnp.bfloat16)
    h2 = jnp.maximum(
        jnp.dot(h1, prepped["w2"], preferred_element_type=jnp.float32)
        + prepped["b2"], 0.0).astype(jnp.bfloat16)
    return (jnp.dot(h2, prepped["w34"], preferred_element_type=jnp.float32)
            + prepped["b34"])


if __name__ == "__main__":
    key = jax.random.PRNGKey(0)
    key, kx, kp = jax.random.split(key, 3)

    batch = 8
    input_dim = 8      # small stand-in for the WESAD feature count
    output_dim = 3

    x = jax.random.normal(kx, (batch, input_dim), jnp.float32)
    params = init_params(kp, input_dim, output_dim)
    prepped = prepare_params(params)

    out = wesad_feedforward(x, prepped)
    out = jax.block_until_ready(out)
    assert out.shape == (batch, output_dim)

    # exact-policy reference (same bf16/f32 rounding as the kernel)
    ref = reference_forward(x, prepped)
    assert jnp.allclose(out, ref, atol=2e-3, rtol=2e-3), (
        float(jnp.max(jnp.abs(out - ref))))

    # loose semantic check against the full-f32 PyTorch-equivalent path
    h1 = jnp.maximum(x @ params["w1"] + params["b1"], 0.0)
    h2 = jnp.maximum(h1 @ params["w2"] + params["b2"], 0.0)
    h3 = h2 @ params["w3"] + params["b3"]
    ref_f32 = h3 @ params["w4"] + params["b4"]
    assert jnp.allclose(out, ref_f32, atol=5e-2, rtol=5e-2), (
        float(jnp.max(jnp.abs(out - ref_f32))))

    print("KERNEL_OK")
</pallas_src>

<mosaic_0001>
module attributes {stable_mosaic.version = 11 : i64} {
  func.func @mlp_kernel(%arg0: i32, %arg1: memref<8x8xbf16, #tpu.memory_space<vmem>>, %arg2: memref<8x128xbf16, #tpu.memory_space<vmem>>, %arg3: memref<1x128xf32, #tpu.memory_space<vmem>>, %arg4: memref<128x256xbf16, #tpu.memory_space<vmem>>, %arg5: memref<1x256xf32, #tpu.memory_space<vmem>>, %arg6: memref<256x3xbf16, #tpu.memory_space<vmem>>, %arg7: memref<1x3xf32, #tpu.memory_space<vmem>>, %arg8: memref<8x3xf32, #tpu.memory_space<vmem>>) attributes {dimension_semantics = [#tpu.dimension_semantics<parallel>], iteration_bounds = array<i64: 1>, scalar_prefetch = 0 : i64, scratch_operands = 0 : i64, tpu.core_type = #tpu.core_type<tc>, window_params = [{transform_indices = @transform_0, window_bounds = array<i64: 8, 8>}, {pipeline_mode = #tpu.pipeline_mode<synchronous>, transform_indices = @transform_1, window_bounds = array<i64: 8, 128>}, {pipeline_mode = #tpu.pipeline_mode<synchronous>, transform_indices = @transform_2, window_bounds = array<i64: 1, 128>}, {pipeline_mode = #tpu.pipeline_mode<synchronous>, transform_indices = @transform_3, window_bounds = array<i64: 128, 256>}, {pipeline_mode = #tpu.pipeline_mode<synchronous>, transform_indices = @transform_4, window_bounds = array<i64: 1, 256>}, {pipeline_mode = #tpu.pipeline_mode<synchronous>, transform_indices = @transform_5, window_bounds = array<i64: 256, 3>}, {pipeline_mode = #tpu.pipeline_mode<synchronous>, transform_indices = @transform_6, window_bounds = array<i64: 1, 3>}, {transform_indices = @transform_7, window_bounds = array<i64: 8, 3>}]} {
    %c0 = arith.constant 0 : index
    %c0_0 = arith.constant 0 : index
    %0 = vector.load %arg1[%c0, %c0_0] : memref<8x8xbf16, #tpu.memory_space<vmem>>, vector<8x8xbf16>
    %c0_1 = arith.constant 0 : index
    %c0_2 = arith.constant 0 : index
    %1 = vector.load %arg2[%c0_1, %c0_2] : memref<8x128xbf16, #tpu.memory_space<vmem>>, vector<8x128xbf16>
    %cst = arith.constant dense<0.000000e+00> : vector<8x128xf32>
    %2 = tpu.matmul %0, %1, %cst {dimension_numbers = #tpu.dot_dimension_numbers<[1], [0], [0], [1], [0, 0, 1, 1], [], []>} : vector<8x8xbf16>, vector<8x128xbf16>, vector<8x128xf32> -> vector<8x128xf32>
    %c0_3 = arith.constant 0 : index
    %c0_4 = arith.constant 0 : index
    %3 = vector.load %arg3[%c0_3, %c0_4] : memref<1x128xf32, #tpu.memory_space<vmem>>, vector<1x128xf32>
    %4 = vector.broadcast %3 : vector<1x128xf32> to vector<8x128xf32>
    %5 = arith.addf %2, %4 : vector<8x128xf32>
    %cst_5 = arith.constant 0.000000e+00 : f32
    %6 = vector.broadcast %cst_5 : f32 to vector<8x128xf32>
    %7 = arith.maximumf %5, %6 : vector<8x128xf32>
    %8 = arith.truncf %7 : vector<8x128xf32> to vector<8x128xbf16>
    %c0_6 = arith.constant 0 : index
    %c0_7 = arith.constant 0 : index
    %9 = vector.load %arg4[%c0_6, %c0_7] : memref<128x256xbf16, #tpu.memory_space<vmem>>, vector<128x256xbf16>
    %cst_8 = arith.constant dense<0.000000e+00> : vector<8x256xf32>
    %10 = tpu.matmul %8, %9, %cst_8 {dimension_numbers = #tpu.dot_dimension_numbers<[1], [0], [0], [1], [0, 0, 1, 1], [], []>} : vector<8x128xbf16>, vector<128x256xbf16>, vector<8x256xf32> -> vector<8x256xf32>
    %c0_9 = arith.constant 0 : index
    %c0_10 = arith.constant 0 : index
    %11 = vector.load %arg5[%c0_9, %c0_10] : memref<1x256xf32, #tpu.memory_space<vmem>>, vector<1x256xf32>
    %12 = vector.broadcast %11 : vector<1x256xf32> to vector<8x256xf32>
    %13 = arith.addf %10, %12 : vector<8x256xf32>
    %cst_11 = arith.constant 0.000000e+00 : f32
    %14 = vector.broadcast %cst_11 : f32 to vector<8x256xf32>
    %15 = arith.maximumf %13, %14 : vector<8x256xf32>
    %16 = arith.truncf %15 : vector<8x256xf32> to vector<8x256xbf16>
    %c0_12 = arith.constant 0 : index
    %c0_13 = arith.constant 0 : index
    %17 = vector.load %arg6[%c0_12, %c0_13] : memref<256x3xbf16, #tpu.memory_space<vmem>>, vector<256x3xbf16>
    %cst_14 = arith.constant dense<0.000000e+00> : vector<8x3xf32>
    %18 = tpu.matmul %16, %17, %cst_14 {dimension_numbers = #tpu.dot_dimension_numbers<[1], [0], [0], [1], [0, 0, 1, 1], [], []>} : vector<8x256xbf16>, vector<256x3xbf16>, vector<8x3xf32> -> vector<8x3xf32>
    %c0_15 = arith.constant 0 : index
    %c0_16 = arith.constant 0 : index
    %19 = vector.load %arg7[%c0_15, %c0_16] : memref<1x3xf32, #tpu.memory_space<vmem>>, vector<1x3xf32>
    %20 = vector.broadcast %19 : vector<1x3xf32> to vector<8x3xf32>
    %21 = arith.addf %18, %20 : vector<8x3xf32>
    %c0_17 = arith.constant 0 : index
    %c0_18 = arith.constant 0 : index
    %22 = vector.load %arg8[%c0_17, %c0_18] : memref<8x3xf32, #tpu.memory_space<vmem>>, vector<8x3xf32>
    tpu.vector_store %arg8[%c0_17, %c0_18], %21 {strides = array<i32>} : memref<8x3xf32, #tpu.memory_space<vmem>>, vector<8x3xf32>,
    return
  }
  func.func @transform_0(%arg0: i32) -> (i32, i32) {
    %c0_i32 = arith.constant 0 : i32
    %c0_i32_0 = arith.constant 0 : i32
    return %arg0, %c0_i32 : i32, i32
  }
  func.func @transform_1(%arg0: i32) -> (i32, i32) {
    %c0_i32 = arith.constant 0 : i32
    %c0_i32_0 = arith.constant 0 : i32
    %c0_i32_1 = arith.constant 0 : i32
    return %c0_i32, %c0_i32_0 : i32, i32
  }
  func.func @transform_2(%arg0: i32) -> (i32, i32) {
    %c0_i32 = arith.constant 0 : i32
    %c0_i32_0 = arith.constant 0 : i32
    %c0_i32_1 = arith.constant 0 : i32
    return %c0_i32, %c0_i32_0 : i32, i32
  }
  func.func @transform_3(%arg0: i32) -> (i32, i32) {
    %c0_i32 = arith.constant 0 : i32
    %c0_i32_0 = arith.constant 0 : i32
    %c0_i32_1 = arith.constant 0 : i32
    return %c0_i32, %c0_i32_0 : i32, i32
  }
  func.func @transform_4(%arg0: i32) -> (i32, i32) {
    %c0_i32 = arith.constant 0 : i32
    %c0_i32_0 = arith.constant 0 : i32
    %c0_i32_1 = arith.constant 0 : i32
    return %c0_i32, %c0_i32_0 : i32, i32
  }
  func.func @transform_5(%arg0: i32) -> (i32, i32) {
    %c0_i32 = arith.constant 0 : i32
    %c0_i32_0 = arith.constant 0 : i32
    %c0_i32_1 = arith.constant 0 : i32
    return %c0_i32, %c0_i32_0 : i32, i32
  }
  func.func @transform_6(%arg0: i32) -> (i32, i32) {
    %c0_i32 = arith.constant 0 : i32
    %c0_i32_0 = arith.constant 0 : i32
    %c0_i32_1 = arith.constant 0 : i32
    return %c0_i32, %c0_i32_0 : i32, i32
  }
  func.func @transform_7(%arg0: i32) -> (i32, i32) {
    %c0_i32 = arith.constant 0 : i32
    %c0_i32_0 = arith.constant 0 : i32
    return %arg0, %c0_i32 : i32, i32
  }
}

</mosaic_0001>

<llo_original>
// kernel: wesad_feedforward.1
$region0: #{wesad_feedforward.1}
  #allocation0 [shape = 'u32[]', space=smem, size = 0x4, offset = 0x4, fixed_abs, tag = 'smem constant byte address 0x4 - core index']
  #allocation1 [shape = 'u32[144,128]{1,0:T(1,128)}', space=vmem, size = 0x12000, scoped, tag = 'internal scratch']
  %s0 = inlined_call_operand.hbm [shape: bf16[8,8], index: 0, kind: input, shape index: {}]
  %s1 = inlined_call_operand.hbm [shape: bf16[8,128], index: 1, kind: input, shape index: {}]
  %s2 = inlined_call_operand.hbm [shape: f32[1,128], index: 2, kind: input, shape index: {}]
  %s3 = inlined_call_operand.hbm [shape: bf16[128,256], index: 3, kind: input, shape index: {}]
  %s4 = inlined_call_operand.hbm [shape: f32[1,256], index: 4, kind: input, shape index: {}]
  %s5 = inlined_call_operand.hbm [shape: bf16[256,3], index: 5, kind: input, shape index: {}]
  %s6 = inlined_call_operand.hbm [shape: f32[1,3], index: 6, kind: input, shape index: {}]
  %s7 = inlined_call_operand.hbm [shape: f32[8,3], index: 7, kind: output, shape index: {}]
  %s8 = sld [smem:[#allocation0]]
  $region66: #{wesad_feedforward.1} parent=0
    _
  %s10 = ssub.s32 1, %s8
  %s11 = scalar_select 0, %s10, %s8
  $region1: #{wesad_feedforward.1} parent=0
    #allocation2 [shape = 'u8[2048]{0}', space=vmem, size = 0x800, scoped, tag = 'input window, operand 0, single buffered']
    #allocation3 [shape = 's32[1]{0}', space=sflag, size = 0x4, scoped, tag = 'scoped memory for wesad_feedforward.1']
    #allocation4 [shape = 's32[1]{0}', space=sflag, size = 0x4, scoped, tag = 'scoped memory for wesad_feedforward.1']
    #allocation5 [shape = 'u8[2048]{0}', space=vmem, size = 0x800, scoped, tag = 'input window, operand 1, single buffered']
    #allocation6 [shape = 's32[1]{0}', space=sflag, size = 0x4, scoped, tag = 'scoped memory for wesad_feedforward.1']
    #allocation7 [shape = 'u8[512]{0}', space=vmem, size = 0x400, scoped, tag = 'input window, operand 2, single buffered']
    #allocation8 [shape = 'u8[65536]{0}', space=vmem, size = 0x10000, scoped, tag = 'input window, operand 3, single buffered']
    #allocation9 [shape = 's32[1]{0}', space=sflag, size = 0x4, scoped, tag = 'scoped memory for wesad_feedforward.1']
    #allocation10 [shape = 'u8[1024]{0}', space=vmem, size = 0x400, scoped, tag = 'input window, operand 4, single buffered']
    #allocation11 [shape = 'u8[65536]{0}', space=vmem, size = 0x10000, scoped, tag = 'input window, operand 5, single buffered']
    #allocation12 [shape = 's32[1]{0}', space=sflag, size = 0x4, scoped, tag = 'scoped memory for wesad_feedforward.1']
    #allocation13 [shape = 'u8[512]{0}', space=vmem, size = 0x400, scoped, tag = 'input window, operand 6, single buffered']
    #allocation14 [shape = 'u8[4096]{0}', space=vmem, size = 0x1000, scoped, tag = 'output window, operand 0, single buffered']
    %12 = vsyncpa [#allocation3], 0
    %13 = vsyncpa [#allocation6], 0
    %14 = vsyncpa [#allocation9], 0
    %15 = vsyncpa [#allocation12], 0
    %16 = vsyncpa [#allocation4], 0
    // Predicated region
    $region2: #{wesad_feedforward.1} parent=1 // pred_check
      _
    $region3: #{wesad_feedforward.1} parent=1 // pred_check_branch
      %18 = sbr.rel (0) target = $region5
    $region4: #{wesad_feedforward.1} parent=1 // pred_region
      %s20 = ssub.s32 64, 64
      %21 = vsyncadd [#allocation3], %s20
      %s23 = sshll.u32 [#allocation2], 4
      %s24 = int_to_ptr.vmem [resolvable:$true] %s23
      %26 = dma.hbm_to_vmem [thread:$0]  %s0, 64, %s24, [#allocation3]
    $region5: #{wesad_feedforward.1} parent=1 // pred_fallthru
      _
    // Predicated region
    $region6: #{wesad_feedforward.1} parent=1 // pred_check
      _
    $region7: #{wesad_feedforward.1} parent=1 // pred_check_branch
      %28 = sbr.rel (0) target = $region9
    $region8: #{wesad_feedforward.1} parent=1 // pred_region
      %s30 = ssub.s32 64, 64
      %31 = vsyncadd [#allocation6], %s30
      %s33 = sshll.u32 [#allocation5], 4
      %s34 = int_to_ptr.vmem [resolvable:$true] %s33
      %36 = dma.hbm_to_vmem [thread:$0]  %s1, 64, %s34, [#allocation6]
    $region9: #{wesad_feedforward.1} parent=1 // pred_fallthru
      _
    // Predicated region
    $region10: #{wesad_feedforward.1} parent=1 // pred_check
      _
    $region11: #{wesad_feedforward.1} parent=1 // pred_check_branch
      %38 = sbr.rel (0) target = $region13
    $region12: #{wesad_feedforward.1} parent=1 // pred_region
      %s40 = ssub.s32 16, 16
      %41 = vsyncadd [#allocation6], %s40
      %s43 = sshll.u32 [#allocation7], 4
      %s44 = int_to_ptr.vmem [resolvable:$true] %s43
      %46 = dma.hbm_to_vmem [thread:$0]  %s2, 16, %s44, [#allocation6]
    $region13: #{wesad_feedforward.1} parent=1 // pred_fallthru
      _
    // Predicated region
    $region14: #{wesad_feedforward.1} parent=1 // pred_check
      _
    $region15: #{wesad_feedforward.1} parent=1 // pred_check_branch
      %48 = sbr.rel (0) target = $region17
    $region16: #{wesad_feedforward.1} parent=1 // pred_region
      %s50 = ssub.s32 2048, 2048
      %51 = vsyncadd [#allocation9], %s50
      %s52 = sshll.u32 [#allocation8], 4
      %s53 = int_to_ptr.vmem [resolvable:$true] %s52
      %58 = dma.hbm_to_vmem [thread:$0]  %s3, 2048, %s53, [#allocation9], 128, 128, 8
    $region17: #{wesad_feedforward.1} parent=1 // pred_fallthru
      _
    // Predicated region
    $region18: #{wesad_feedforward.1} parent=1 // pred_check
      _
    $region19: #{wesad_feedforward.1} parent=1 // pred_check_branch
      %60 = sbr.rel (0) target = $region21
    $region20: #{wesad_feedforward.1} parent=1 // pred_region
      %s62 = ssub.s32 32, 32
      %63 = vsyncadd [#allocation9], %s62
      %s65 = sshll.u32 [#allocation10], 4
      %s66 = int_to_ptr.vmem [resolvable:$true] %s65
      %68 = dma.hbm_to_vmem [thread:$0]  %s4, 32, %s66, [#allocation9]
    $region21: #{wesad_feedforward.1} parent=1 // pred_fallthru
      _
    // Predicated region
    $region22: #{wesad_feedforward.1} parent=1 // pred_check
      _
    $region23: #{wesad_feedforward.1} parent=1 // pred_check_branch
      %70 = sbr.rel (0) target = $region25
    $region24: #{wesad_feedforward.1} parent=1 // pred_region
      %s72 = ssub.s32 2048, 2048
      %73 = vsyncadd [#allocation12], %s72
      %s74 = sshll.u32 [#allocation11], 4
      %s75 = int_to_ptr.vmem [resolvable:$true] %s74
      %80 = dma.hbm_to_vmem [thread:$0]  %s5, 2048, %s75, [#allocation12], 64, 64, 4
    $region25: #{wesad_feedforward.1} parent=1 // pred_fallthru
      _
    // Predicated region
    $region26: #{wesad_feedforward.1} parent=1 // pred_check
      _
    $region27: #{wesad_feedforward.1} parent=1 // pred_check_branch
      %82 = sbr.rel (0) target = $region29
    $region28: #{wesad_feedforward.1} parent=1 // pred_region
      %s84 = ssub.s32 16, 16
      %85 = vsyncadd [#allocation12], %s84
      %s87 = sshll.u32 [#allocation13], 4
      %s88 = int_to_ptr.vmem [resolvable:$true] %s87
      %90 = dma.hbm_to_vmem [thread:$0]  %s6, 16, %s88, [#allocation12]
    $region29: #{wesad_feedforward.1} parent=1 // pred_fallthru
      _
    // Predicated region
    $region30: #{wesad_feedforward.1} parent=1 // pred_check
      _
    $region31: #{wesad_feedforward.1} parent=1 // pred_check_branch
      %92 = sbr.rel (0) target = $region33
    $region32: #{wesad_feedforward.1} parent=1 // pred_region
      %93 = dma.done [#allocation3], 64
    $region33: #{wesad_feedforward.1} parent=1 // pred_fallthru
      _
    // Predicated region
    $region34: #{wesad_feedforward.1} parent=1 // pred_check
      _
    $region35: #{wesad_feedforward.1} parent=1 // pred_check_branch
      %95 = sbr.rel (0) target = $region37
    $region36: #{wesad_feedforward.1} parent=1 // pred_region
      %96 = dma.done [#allocation6], 64
    $region37: #{wesad_feedforward.1} parent=1 // pred_fallthru
      _
    // Predicated region
    $region38: #{wesad_feedforward.1} parent=1 // pred_check
      _
    $region39: #{wesad_feedforward.1} parent=1 // pred_check_branch
      %98 = sbr.rel (0) target = $region41
    $region40: #{wesad_feedforward.1} parent=1 // pred_region
      %99 = dma.done [#allocation6], 16
    $region41: #{wesad_feedforward.1} parent=1 // pred_fallthru
      _
    // Predicated region
    $region42: #{wesad_feedforward.1} parent=1 // pred_check
      _
    $region43: #{wesad_feedforward.1} parent=1 // pred_check_branch
      %101 = sbr.rel (0) target = $region45
    $region44: #{wesad_feedforward.1} parent=1 // pred_region
      %102 = dma.done [#allocation9], 2048
    $region45: #{wesad_feedforward.1} parent=1 // pred_fallthru
      _
    // Predicated region
    $region46: #{wesad_feedforward.1} parent=1 // pred_check
      _
    $region47: #{wesad_feedforward.1} parent=1 // pred_check_branch
      %104 = sbr.rel (0) target = $region49
    $region48: #{wesad_feedforward.1} parent=1 // pred_region
      %105 = dma.done [#allocation9], 32
    $region49: #{wesad_feedforward.1} parent=1 // pred_fallthru
      _
    // Predicated region
    $region50: #{wesad_feedforward.1} parent=1 // pred_check
      _
    $region51: #{wesad_feedforward.1} parent=1 // pred_check_branch
      %107 = sbr.rel (0) target = $region53
    $region52: #{wesad_feedforward.1} parent=1 // pred_region
      %108 = dma.done [#allocation12], 2048
    $region53: #{wesad_feedforward.1} parent=1 // pred_fallthru
      _
    // Predicated region
    $region54: #{wesad_feedforward.1} parent=1 // pred_check
      _
    $region55: #{wesad_feedforward.1} parent=1 // pred_check_branch
      %110 = sbr.rel (0) target = $region57
    $region56: #{wesad_feedforward.1} parent=1 // pred_region
      %111 = dma.done [#allocation12], 16
    $region57: #{wesad_feedforward.1} parent=1 // pred_fallthru
      _
    %v113 = vld [vmem:[#allocation2] sm:$0xf]
    %v114 = vld [vmem:[#allocation5] sm:$0xf]
    %v115 = vld [vmem:[#allocation7] sm:$0x1]
    %v117 = vlaneseq
    %v118 = vshrl.u32 %v117, 7
    %v119 = vsub.s32 0, %v118
    %v120 = vrot.slane %v115, %v119
    %vm122 = vcmask 64512
    %v124 = vsel %vm122, %v113, 0
    %vm126 = vcmask 1043456
    %v128 = vsel %vm126, %v114, 0
    %130 = vmatprep.subr.bf16.mxu0 0
    %131 = vmatpush1.bf16.msra.mxu0 %v128
    %132 = vmatprep.subr.bf16.mxu0 0
    %133 = vmatpush1.bf16.msra.mxu0 0
    %134 = vmatprep.subr.bf16.mxu0 0
    %135 = vmatpush1.bf16.msra.mxu0 0
    %136 = vmatprep.subr.bf16.mxu0 0
    %137 = vmatpush1.bf16.msra.mxu0 0
    %138 = vmatprep.subr.bf16.mxu0 0
    %139 = vmatpush1.bf16.msra.mxu0 0
    %140 = vmatprep.subr.bf16.mxu0 0
    %141 = vmatpush1.bf16.msra.mxu0 0
    %142 = vmatprep.subr.bf16.mxu0 0
    %143 = vmatpush1.bf16.msra.mxu0 0
    %144 = vmatprep.subr.bf16.mxu0 0
    %145 = vmatpush1.bf16.msra.mxu0 0
    %146 = vmatprep.subr.bf16.mxu0 0
    %147 = vmatpush1.bf16.msra.mxu0 0
    %148 = vmatprep.subr.bf16.mxu0 0
    %149 = vmatpush1.bf16.msra.mxu0 0
    %150 = vmatprep.subr.bf16.mxu0 0
    %151 = vmatpush1.bf16.msra.mxu0 0
    %152 = vmatprep.subr.bf16.mxu0 0
    %153 = vmatpush1.bf16.msra.mxu0 0
    %154 = vmatprep.subr.bf16.mxu0 0
    %155 = vmatpush1.bf16.msra.mxu0 0
    %156 = vmatprep.subr.bf16.mxu0 0
    %157 = vmatpush1.bf16.msra.mxu0 0
    %158 = vmatprep.subr.bf16.mxu0 0
    %159 = vmatpush1.bf16.msra.mxu0 0
    %160 = vmatprep.subr.bf16.mxu0 0
    %161 = vmatpush1.bf16.msra.mxu0 0
    %162 = vmatprep.mubr.bf16.mxu0 0
    %163 = vmatmul.mubr.bf16.gmra.mrb[0].mxu0 %v124
    %v164 = vpop.f32.mrb[0].mxu0
    %v165 = vadd.f32 %v120, %v164
    %v166 = vpop.f32.mrb[0].mxu0
    %v167 = vpop.f32.mrb[0].mxu0
    %v168 = vpop.f32.mrb[0].mxu0
    %169 = vdwg.mxu0
    %v170 = vmax.f32 %v165, 0.0
    %v171 = vpack.c.bf16 %v170, %v170
    %v172 = vld [vmem:[#allocation8] sm:$0xff]
    %v173 = vld [vmem:[#allocation8 + $0x8] sm:$0xff]
    %v174 = vld [vmem:[#allocation8 + $0x10] sm:$0xff]
    %v175 = vld [vmem:[#allocation8 + $0x18] sm:$0xff]
    %v176 = vld [vmem:[#allocation8 + $0x20] sm:$0xff]
    %v177 = vld [vmem:[#allocation8 + $0x28] sm:$0xff]
    %v178 = vld [vmem:[#allocation8 + $0x30] sm:$0xff]
    %v179 = vld [vmem:[#allocation8 + $0x38] sm:$0xff]
    %v180 = vld [vmem:[#allocation8 + $0x40] sm:$0xff]
    %v181 = vld [vmem:[#allocation8 + $0x48] sm:$0xff]
    %v182 = vld [vmem:[#allocation8 + $0x50] sm:$0xff]
    %v183 = vld [vmem:[#allocation8 + $0x58] sm:$0xff]
    %v184 = vld [vmem:[#allocation8 + $0x60] sm:$0xff]
    %v185 = vld [vmem:[#allocation8 + $0x68] sm:$0xff]
    %v186 = vld [vmem:[#allocation8 + $0x70] sm:$0xff]
    %v187 = vld [vmem:[#allocation8 + $0x78] sm:$0xff]
    %v188 = vld [vmem:[#allocation10] sm:$0x3]
    %v190 = vlaneseq
    %v191 = vshrl.u32 %v190, 7
    %v192 = vsub.s32 0, %v191
    %v193 = vrot.slane %v188, %v192
    %v194 = vlaneseq
    %v195 = vshrl.u32 %v194, 7
    %v196 = vsub.s32 1, %v195
    %v197 = vrot.slane %v188, %v196
    %v216 = vunpack.c.l.b16 %v172
    %v217 = vunpack.c.h.b16 %v172
    %v218 = vunpack.c.l.b16 %v173
    %v219 = vunpack.c.h.b16 %v173
    %v220 = vunpack.c.l.b16 %v174
    %v221 = vunpack.c.h.b16 %v174
    %v222 = vunpack.c.l.b16 %v175
    %v223 = vunpack.c.h.b16 %v175
    %v224 = vunpack.c.l.b16 %v176
    %v225 = vunpack.c.h.b16 %v176
    %v226 = vunpack.c.l.b16 %v177
    %v227 = vunpack.c.h.b16 %v177
    %v228 = vunpack.c.l.b16 %v178
    %v229 = vunpack.c.h.b16 %v178
    %v230 = vunpack.c.l.b16 %v179
    %v231 = vunpack.c.h.b16 %v179
    %v232 = vunpack.c.l.b16 %v180
    %v233 = vunpack.c.h.b16 %v180
    %v234 = vunpack.c.l.b16 %v181
    %v235 = vunpack.c.h.b16 %v181
    %v236 = vunpack.c.l.b16 %v182
    %v237 = vunpack.c.h.b16 %v182
    %v238 = vunpack.c.l.b16 %v183
    %v239 = vunpack.c.h.b16 %v183
    %v240 = vunpack.c.l.b16 %v184
    %v241 = vunpack.c.h.b16 %v184
    %v242 = vunpack.c.l.b16 %v185
    %v243 = vunpack.c.h.b16 %v185
    %v244 = vunpack.c.l.b16 %v186
    %v245 = vunpack.c.h.b16 %v186
    %v246 = vunpack.c.l.b16 %v187
    %v247 = vunpack.c.h.b16 %v187
    %v248 = vpack.c.b16 %v218, %v216
    %v249 = vpack.c.b16 %v219, %v217
    %v250 = vpack.c.b16 %v222, %v220
    %v251 = vpack.c.b16 %v223, %v221
    %v252 = vpack.c.b16 %v226, %v224
    %v253 = vpack.c.b16 %v227, %v225
    %v254 = vpack.c.b16 %v230, %v228
    %v255 = vpack.c.b16 %v231, %v229
    %v256 = vpack.c.b16 %v234, %v232
    %v257 = vpack.c.b16 %v235, %v233
    %v258 = vpack.c.b16 %v238, %v236
    %v259 = vpack.c.b16 %v239, %v237
    %v260 = vpack.c.b16 %v242, %v240
    %v261 = vpack.c.b16 %v243, %v241
    %v262 = vpack.c.b16 %v246, %v244
    %v263 = vpack.c.b16 %v247, %v245
    %280 = vmatprep.subr.bf16.mxu0 %v249
    %281 = vmatpush1.bf16.msra.mxu0 %v248
    %282 = vmatprep.subr.bf16.mxu0 %v251
    %283 = vmatpush1.bf16.msra.mxu0 %v250
    %284 = vmatprep.subr.bf16.mxu0 %v253
    %285 = vmatpush1.bf16.msra.mxu0 %v252
    %286 = vmatprep.subr.bf16.mxu0 %v255
    %287 = vmatpush1.bf16.msra.mxu0 %v254
    %288 = vmatprep.subr.bf16.mxu0 %v257
    %289 = vmatpush1.bf16.msra.mxu0 %v256
    %290 = vmatprep.subr.bf16.mxu0 %v259
    %291 = vmatpush1.bf16.msra.mxu0 %v258
    %292 = vmatprep.subr.bf16.mxu0 %v261
    %293 = vmatpush1.bf16.msra.mxu0 %v260
    %294 = vmatprep.subr.bf16.mxu0 %v263
    %295 = vmatpush1.bf16.msra.mxu0 %v262
    %296 = vmatprep.subr.bf16.mxu0 0
    %297 = vmatpush1.bf16.msra.mxu0 0
    %298 = vmatprep.subr.bf16.mxu0 0
    %299 = vmatpush1.bf16.msra.mxu0 0
    %300 = vmatprep.subr.bf16.mxu0 0
    %301 = vmatpush1.bf16.msra.mxu0 0
    %302 = vmatprep.subr.bf16.mxu0 0
    %303 = vmatpush1.bf16.msra.mxu0 0
    %304 = vmatprep.subr.bf16.mxu0 0
    %305 = vmatpush1.bf16.msra.mxu0 0
    %306 = vmatprep.subr.bf16.mxu0 0
    %307 = vmatpush1.bf16.msra.mxu0 0
    %308 = vmatprep.subr.bf16.mxu0 0
    %309 = vmatpush1.bf16.msra.mxu0 0
    %310 = vmatprep.subr.bf16.mxu0 0
    %311 = vmatpush1.bf16.msra.mxu0 0
    %312 = vmatprep.mubr.bf16.mxu0 0
    %313 = vmatmul.mubr.bf16.gmra.mrb[0].mxu0 %v171
    %v314 = vpop.f32.mrb[0].mxu0
    %v315 = vadd.f32 %v193, %v314
    %v316 = vpop.f32.mrb[0].mxu0
    %v317 = vadd.f32 %v197, %v316
    %v318 = vpop.f32.mrb[0].mxu0
    %v319 = vpop.f32.mrb[0].mxu0
    %320 = vdwg.mxu0
    %v321 = vmax.f32 %v315, 0.0
    %v322 = vmax.f32 %v317, 0.0
    %v323 = vpack.c.bf16 %v321, %v321
    %v324 = vpack.c.bf16 %v322, %v322
    %v325 = vld [vmem:[#allocation11] sm:$0xf]
    %v326 = vld [vmem:[#allocation11 + $0x4] sm:$0xf]
    %v327 = vld [vmem:[#allocation11 + $0x8] sm:$0xf]
    %v328 = vld [vmem:[#allocation11 + $0xc] sm:$0xf]
    %v329 = vld [vmem:[#allocation11 + $0x10] sm:$0xf]
    %v330 = vld [vmem:[#allocation11 + $0x14] sm:$0xf]
    %v331 = vld [vmem:[#allocation11 + $0x18] sm:$0xf]
    %v332 = vld [vmem:[#allocation11 + $0x1c] sm:$0xf]
    %v333 = vld [vmem:[#allocation11 + $0x20] sm:$0xf]
    %v334 = vld [vmem:[#allocation11 + $0x24] sm:$0xf]
    %v335 = vld [vmem:[#allocation11 + $0x28] sm:$0xf]
    %v336 = vld [vmem:[#allocation11 + $0x2c] sm:$0xf]
    %v337 = vld [vmem:[#allocation11 + $0x30] sm:$0xf]
    %v338 = vld [vmem:[#allocation11 + $0x34] sm:$0xf]
    %v339 = vld [vmem:[#allocation11 + $0x38] sm:$0xf]
    %v340 = vld [vmem:[#allocation11 + $0x3c] sm:$0xf]
    %v341 = vld [vmem:[#allocation11 + $0x40] sm:$0xf]
    %v342 = vld [vmem:[#allocation11 + $0x44] sm:$0xf]
    %v343 = vld [vmem:[#allocation11 + $0x48] sm:$0xf]
    %v344 = vld [vmem:[#allocation11 + $0x4c] sm:$0xf]
    %v345 = vld [vmem:[#allocation11 + $0x50] sm:$0xf]
    %v346 = vld [vmem:[#allocation11 + $0x54] sm:$0xf]
    %v347 = vld [vmem:[#allocation11 + $0x58] sm:$0xf]
    %v348 = vld [vmem:[#allocation11 + $0x5c] sm:$0xf]
    %v349 = vld [vmem:[#allocation11 + $0x60] sm:$0xf]
    %v350 = vld [vmem:[#allocation11 + $0x64] sm:$0xf]
    %v351 = vld [vmem:[#allocation11 + $0x68] sm:$0xf]
    %v352 = vld [vmem:[#allocation11 + $0x6c] sm:$0xf]
    %v353 = vld [vmem:[#allocation11 + $0x70] sm:$0xf]
    %v354 = vld [vmem:[#allocation11 + $0x74] sm:$0xf]
    %v355 = vld [vmem:[#allocation11 + $0x78] sm:$0xf]
    %v356 = vld [vmem:[#allocation11 + $0x7c] sm:$0xf]
    %v357 = vld [vmem:[#allocation13] sm:$0x1]
    %v359 = vlaneseq
    %v360 = vshrl.u32 %v359, 7
    %v361 = vsub.s32 0, %v360
    %v362 = vrot.slane %v357, %v361
    %v396 = vunpack.c.l.b16 %v325
    %v397 = vunpack.c.l.b16 %v326
    %v398 = vunpack.c.l.b16 %v327
    %v399 = vunpack.c.l.b16 %v328
    %v400 = vunpack.c.l.b16 %v329
    %v401 = vunpack.c.l.b16 %v330
    %v402 = vunpack.c.l.b16 %v331
    %v403 = vunpack.c.l.b16 %v332
    %v404 = vunpack.c.l.b16 %v333
    %v405 = vunpack.c.l.b16 %v334
    %v406 = vunpack.c.l.b16 %v335
    %v407 = vunpack.c.l.b16 %v336
    %v408 = vunpack.c.l.b16 %v337
    %v409 = vunpack.c.l.b16 %v338
    %v410 = vunpack.c.l.b16 %v339
    %v411 = vunpack.c.l.b16 %v340
    %v412 = vunpack.c.l.b16 %v341
    %v413 = vunpack.c.l.b16 %v342
    %v414 = vunpack.c.l.b16 %v343
    %v415 = vunpack.c.l.b16 %v344
    %v416 = vunpack.c.l.b16 %v345
    %v417 = vunpack.c.l.b16 %v346
    %v418 = vunpack.c.l.b16 %v347
    %v419 = vunpack.c.l.b16 %v348
    %v420 = vunpack.c.l.b16 %v349
    %v421 = vunpack.c.l.b16 %v350
    %v422 = vunpack.c.l.b16 %v351
    %v423 = vunpack.c.l.b16 %v352
    %v424 = vunpack.c.l.b16 %v353
    %v425 = vunpack.c.l.b16 %v354
    %v426 = vunpack.c.l.b16 %v355
    %v427 = vunpack.c.l.b16 %v356
    %v428 = vpack.c.b16 %v397, %v396
    %v429 = vpack.c.b16 %v399, %v398
    %v430 = vpack.c.b16 %v401, %v400
    %v431 = vpack.c.b16 %v403, %v402
    %v432 = vpack.c.b16 %v405, %v404
    %v433 = vpack.c.b16 %v407, %v406
    %v434 = vpack.c.b16 %v409, %v408
    %v435 = vpack.c.b16 %v411, %v410
    %v436 = vpack.c.b16 %v413, %v412
    %v437 = vpack.c.b16 %v415, %v414
    %v438 = vpack.c.b16 %v417, %v416
    %v439 = vpack.c.b16 %v419, %v418
    %v440 = vpack.c.b16 %v421, %v420
    %v441 = vpack.c.b16 %v423, %v422
    %v442 = vpack.c.b16 %v425, %v424
    %v443 = vpack.c.b16 %v427, %v426
    %460 = vmatprep.subr.bf16.mxu0 0
    %461 = vmatpush1.bf16.msra.mxu0 %v428
    %462 = vmatprep.subr.bf16.mxu0 0
    %463 = vmatpush1.bf16.msra.mxu0 %v429
    %464 = vmatprep.subr.bf16.mxu0 0
    %465 = vmatpush1.bf16.msra.mxu0 %v430
    %466 = vmatprep.subr.bf16.mxu0 0
    %467 = vmatpush1.bf16.msra.mxu0 %v431
    %468 = vmatprep.subr.bf16.mxu0 0
    %469 = vmatpush1.bf16.msra.mxu0 %v432
    %470 = vmatprep.subr.bf16.mxu0 0
    %471 = vmatpush1.bf16.msra.mxu0 %v433
    %472 = vmatprep.subr.bf16.mxu0 0
    %473 = vmatpush1.bf16.msra.mxu0 %v434
    %474 = vmatprep.subr.bf16.mxu0 0
    %475 = vmatpush1.bf16.msra.mxu0 %v435
    %476 = vmatprep.subr.bf16.mxu0 0
    %477 = vmatpush1.bf16.msra.mxu0 %v436
    %478 = vmatprep.subr.bf16.mxu0 0
    %479 = vmatpush1.bf16.msra.mxu0 %v437
    %480 = vmatprep.subr.bf16.mxu0 0
    %481 = vmatpush1.bf16.msra.mxu0 %v438
    %482 = vmatprep.subr.bf16.mxu0 0
    %483 = vmatpush1.bf16.msra.mxu0 %v439
    %484 = vmatprep.subr.bf16.mxu0 0
    %485 = vmatpush1.bf16.msra.mxu0 %v440
    %486 = vmatprep.subr.bf16.mxu0 0
    %487 = vmatpush1.bf16.msra.mxu0 %v441
    %488 = vmatprep.subr.bf16.mxu0 0
    %489 = vmatpush1.bf16.msra.mxu0 %v442
    %490 = vmatprep.subr.bf16.mxu0 0
    %491 = vmatpush1.bf16.msra.mxu0 %v443
    %492 = vmatprep.mubr.bf16.mxu0 %v324
    %493 = vmatmul.mubr.bf16.gmra.mrb[0].mxu0 %v323
    %v494 = vpop.f32.mrb[0].mxu0
    %v495 = vadd.f32 %v362, %v494
    %v496 = vpop.f32.mrb[0].mxu0
    %v497 = vpop.f32.mrb[0].mxu0
    %v498 = vpop.f32.mrb[0].mxu0
    %499 = vdwg.mxu0
    %vm500 = vcmask 23552
    %501 = vst.msk [vmem:[#allocation14] sm:$0xff] %vm500, %v495
    // Predicated region
    $region58: #{wesad_feedforward.1} parent=1 // pred_check
      _
    $region59: #{wesad_feedforward.1} parent=1 // pred_check_branch
      %503 = sbr.rel (0) target = $region61
    $region60: #{wesad_feedforward.1} parent=1 // pred_region
      %s505 = ssub.s32 128, 128
      %506 = vsyncadd [#allocation4], %s505
      %s508 = sshll.u32 [#allocation14], 4
      %s509 = int_to_ptr.vmem [resolvable:$true] %s508
      %511 = dma.vmem_to_hbm [thread:$0]  %s509, 128, %s7, [#allocation4]
    $region61: #{wesad_feedforward.1} parent=1 // pred_fallthru
      _
    // Predicated region
    $region62: #{wesad_feedforward.1} parent=1 // pred_check
      _
    $region63: #{wesad_feedforward.1} parent=1 // pred_check_branch
      %513 = sbr.rel (0) target = $region65
    $region64: #{wesad_feedforward.1} parent=1 // pred_region
      %514 = dma.done [#allocation4], 128
    $region65: #{wesad_feedforward.1} parent=1 // pred_fallthru
      _
    %515 = vsyncpa [#allocation3], 1
    %516 = vsyncpa [#allocation6], 1
    %517 = vsyncpa [#allocation9], 1
    %518 = vsyncpa [#allocation12], 1
    %519 = vsyncpa [#allocation4], 1

</llo_original>
